<compile_context>
chip_gen: v7x
topology: tpu7x:2x2x1
jax: 0.10.0
libtpu: 0.0.40
codegen_flags: <defaults>
</compile_context>

<pallas_src>
import functools

import jax
import jax.numpy as jnp
from jax.experimental import pallas as pl
from jax.experimental.pallas import tpu as pltpu


def _cdiv(a, b):
    return -(-a // b)


def _round_up(a, m):
    return _cdiv(a, m) * m


def _vmem_capacity_bytes():
    """Per-core VMEM capacity; conservative fallback when the query fails."""
    try:
        cap = int(pltpu.get_tpu_info().vmem_capacity_bytes)
        if cap > 0:
            return cap
    except Exception:
        pass
    kind = ""
    try:
        kind = jax.devices()[0].device_kind.lower()
    except Exception:
        pass
    if "v5" in kind or "v6" in kind:
        return 128 * 1024 * 1024
    return 64 * 1024 * 1024  # v7x / unknown: conservative


def _num_tensorcores():
    """Only v7x (among the targets) has 2 TensorCores per chip."""
    try:
        if "v7" in jax.devices()[0].device_kind.lower():
            return 2
    except Exception:
        pass
    return 1


def _instance_norm_kernel(x_ref, gb_ref, o_ref, *, epsilon, hw, tr):
    # x_ref / o_ref: (TR, HW) tile.  gb_ref: resident (n_blocks*TR, 2) table
    # holding [gamma | beta] per row; slice this grid step's rows in-kernel.
    row0 = pl.program_id(0) * tr
    if tr % 8 == 0:
        row0 = pl.multiple_of(row0, 8)
    gb = gb_ref[pl.ds(row0, tr), :]
    g = gb[:, 0:1]
    b = gb[:, 1:2]

    x = x_ref[...].astype(jnp.float32)
    mean = jnp.mean(x, axis=-1, keepdims=True)
    xc = x - mean  # transient: only feeds the variance reduction
    # torch.std default: unbiased (divide by HW - 1); eps added to std.
    # (HW == 1 is guarded against a trace-time ZeroDivisionError; torch would
    # produce NaN in that degenerate case.)
    var = jnp.sum(xc * xc, axis=-1, keepdims=True) * jnp.float32(1.0 / max(hw - 1, 1))
    std = jnp.sqrt(var)

    # Fold the mean into the affine: one divide per ROW, then a single
    # multiply + add per element in the store pass.
    scale = g / (std + jnp.float32(epsilon))
    bias = b - mean * scale

    if o_ref.dtype == jnp.float32:
        o_ref[...] = (x * scale + bias).astype(o_ref.dtype)
    else:
        # Low-precision final pass (bf16 VPU on v6e/v7x); stats stayed in f32.
        o_ref[...] = (x_ref[...].astype(o_ref.dtype) * scale.astype(o_ref.dtype)
                      + bias.astype(o_ref.dtype))


def instance_norm(x, gamma, beta, epsilon=1e-6):
    """x: [N, C, H, W]; gamma/beta have C elements (e.g. shape (C, 1, 1))."""
    N, C, H, W = x.shape
    NC, HW = N * C, H * W
    dtype = x.dtype
    itemsize = jnp.dtype(dtype).itemsize
    # Sublane alignment for the row (second-minor) axis.
    sub = {4: 8, 2: 16, 1: 32}.get(itemsize, 8)

    vmem_cap = _vmem_capacity_bytes()
    num_tc = _num_tensorcores()

    # --- Row-tile selection --------------------------------------------------
    # Pipelined working set per step ~ 2x in + 2x out blocks + ~2 f32 temps per
    # row; keep it around a quarter of VMEM so the default double-buffering
    # plus Mosaic scratch always fit.
    budget = vmem_cap // 4
    per_row = HW * (4 * itemsize + 2 * 4)
    vmem_rows = max(sub, (budget // max(per_row, 1)) // sub * sub)
    # TODO(synk): when per_row * sub > budget (very large H*W, e.g. 512x512 f32
    # on v7x's 64 MiB VMEM) split HW into a second "arbitrary" grid axis with
    # running sum / sum-of-squares scratch and a finalize pass.

    if NC <= sub:
        tr = NC  # full-dim block is exempt from the (8, 128) divisibility rule
    else:
        tr = max(sub, min(vmem_rows, (NC // sub) * sub))
        if num_tc > 1:
            # Dual-TC chips (v7x): keep >= 2 blocks so both cores get work.
            half = _round_up(_cdiv(NC, 2), sub)
            tr = min(tr, max(sub, half))

    n_blocks = _cdiv(NC, tr)
    if num_tc > 1 and n_blocks > 1 and n_blocks % 2 == 1:
        # Even block count -> even split of the "parallel" axis across 2 TCs.
        tr = max(sub, _round_up(_cdiv(NC, n_blocks + 1), sub))
        n_blocks = _cdiv(NC, tr)

    x2d = x.reshape(NC, HW)

    # Packed per-row [gamma, beta] table (NC*8 bytes): padded only up to
    # n_blocks*tr rows (tiny, unlike padding x) and kept VMEM-resident for the
    # whole grid -> no per-step narrow-lane DMA.
    g_row = jnp.broadcast_to(gamma.reshape(1, C), (N, C)).reshape(NC, 1)
    b_row = jnp.broadcast_to(beta.reshape(1, C), (N, C)).reshape(NC, 1)
    gb = jnp.concatenate([g_row, b_row], axis=1).astype(jnp.float32)
    nc_gb = n_blocks * tr
    if nc_gb != NC:
        gb = jnp.pad(gb, ((0, nc_gb - NC), (0, 0)))

    kernel = functools.partial(_instance_norm_kernel, epsilon=epsilon, hw=HW, tr=tr)

    out2d = pl.pallas_call(
        kernel,
        out_shape=jax.ShapeDtypeStruct((NC, HW), dtype),
        grid_spec=pltpu.PrefetchScalarGridSpec(
            num_scalar_prefetch=0,
            grid=(n_blocks,),
            in_specs=[
                pl.BlockSpec((tr, HW), lambda i: (i, 0)),
                pl.BlockSpec((nc_gb, 2), lambda i: (0, 0)),  # resident table
            ],
            out_specs=pl.BlockSpec((tr, HW), lambda i: (i, 0)),
        ),
        compiler_params=pltpu.CompilerParams(
            dimension_semantics=("parallel",),
            vmem_limit_bytes=min(int(0.75 * vmem_cap), 112 * 1024 * 1024),
        ),
    )(x2d, gb)

    return out2d.reshape(N, C, H, W)


def instance_norm_ref(x, gamma, beta, epsilon=1e-6):
    """Pure-JAX reference mirroring the PyTorch module exactly."""
    N, C, H, W = x.shape
    xf = x.reshape(N, C, -1).astype(jnp.float32)
    mean = xf.mean(-1, keepdims=True)
    std = jnp.sqrt(((xf - mean) ** 2).sum(-1, keepdims=True) / (H * W - 1))  # unbiased
    mean = mean.reshape(N, C, 1, 1)
    std = std.reshape(N, C, 1, 1)
    g = gamma.reshape(1, C, 1, 1).astype(jnp.float32)
    b = beta.reshape(1, C, 1, 1).astype(jnp.float32)
    return (g * (x.astype(jnp.float32) - mean) / (std + epsilon) + b).astype(x.dtype)


if __name__ == "__main__":
    key = jax.random.PRNGKey(0)
    kx, kg, kb = jax.random.split(key, 3)

    # Main case (small shapes consistent with the module).
    N, C, H, W = 2, 4, 16, 16
    x = jax.random.normal(kx, (N, C, H, W), dtype=jnp.float32)
    gamma = 1.0 + 0.1 * jax.random.normal(kg, (C, 1, 1), dtype=jnp.float32)
    beta = 0.1 * jax.random.normal(kb, (C, 1, 1), dtype=jnp.float32)

    out = jax.block_until_ready(instance_norm(x, gamma, beta, epsilon=1e-6))
    ref = instance_norm_ref(x, gamma, beta, epsilon=1e-6)
    assert out.shape == (N, C, H, W)
    assert jnp.allclose(out, ref, atol=1e-5, rtol=1e-5), "mismatch vs reference"

    # Ragged case: N*C not a multiple of the row tile -> exercises the Pallas
    # edge-block masking path (no host-side pad / slice round-trips).
    N2, C2 = 3, 3
    x2 = jax.random.normal(kx, (N2, C2, H, W), dtype=jnp.float32)
    gamma2 = 1.0 + 0.1 * jax.random.normal(kg, (C2, 1, 1), dtype=jnp.float32)
    beta2 = 0.1 * jax.random.normal(kb, (C2, 1, 1), dtype=jnp.float32)

    out2 = jax.block_until_ready(instance_norm(x2, gamma2, beta2, epsilon=1e-6))
    ref2 = instance_norm_ref(x2, gamma2, beta2, epsilon=1e-6)
    assert out2.shape == (N2, C2, H, W)
    assert jnp.allclose(out2, ref2, atol=1e-5, rtol=1e-5), "mismatch vs reference (ragged)"

    print("KERNEL_OK")
</pallas_src>

<mosaic_0001>
module attributes {stable_mosaic.version = 11 : i64} {
  func.func @_instance_norm_kernel(%arg0: i32, %arg1: memref<8x256xf32, #tpu.memory_space<vmem>>, %arg2: memref<8x2xf32, #tpu.memory_space<vmem>>, %arg3: memref<8x256xf32, #tpu.memory_space<vmem>>) attributes {dimension_semantics = [#tpu.dimension_semantics<parallel>], iteration_bounds = array<i64: 1>, scalar_prefetch = 0 : i64, scratch_operands = 0 : i64, tpu.core_type = #tpu.core_type<tc>, window_params = [{transform_indices = @transform_0, window_bounds = array<i64: 8, 256>}, {pipeline_mode = #tpu.pipeline_mode<synchronous>, transform_indices = @transform_1, window_bounds = array<i64: 8, 2>}, {transform_indices = @transform_2, window_bounds = array<i64: 8, 256>}]} {
    %c8_i32 = arith.constant 8 : i32
    %0 = arith.muli %arg0, %c8_i32 : i32
    %1 = tpu.assume_multiple %0, 8 : i32
    %2 = arith.index_cast %1 : i32 to index
    %c0 = arith.constant 0 : index
    %3 = vector.load %arg2[%2, %c0] : memref<8x2xf32, #tpu.memory_space<vmem>>, vector<8x2xf32>
    %4 = vector.extract_strided_slice %3 {offsets = [0, 0], sizes = [8, 1], strides = [1, 1]} : vector<8x2xf32> to vector<8x1xf32>
    %5 = vector.extract_strided_slice %3 {offsets = [0, 1], sizes = [8, 1], strides = [1, 1]} : vector<8x2xf32> to vector<8x1xf32>
    %c0_0 = arith.constant 0 : index
    %c0_1 = arith.constant 0 : index
    %6 = vector.load %arg1[%c0_0, %c0_1] : memref<8x256xf32, #tpu.memory_space<vmem>>, vector<8x256xf32>
    %cst = arith.constant dense<0.000000e+00> : vector<8xf32>
    %7 = vector.multi_reduction <add>, %6, %cst [1] : vector<8x256xf32> to vector<8xf32>
    %8 = vector.shape_cast %7 : vector<8xf32> to vector<8x1xf32>
    %cst_2 = arith.constant 2.560000e+02 : f32
    %9 = vector.broadcast %cst_2 : f32 to vector<8x1xf32>
    %10 = arith.divf %8, %9 : vector<8x1xf32>
    %11 = vector.broadcast %10 : vector<8x1xf32> to vector<8x256xf32>
    %12 = arith.subf %6, %11 : vector<8x256xf32>
    %13 = arith.mulf %12, %12 : vector<8x256xf32>
    %cst_3 = arith.constant dense<0.000000e+00> : vector<8xf32>
    %14 = vector.multi_reduction <add>, %13, %cst_3 [1] : vector<8x256xf32> to vector<8xf32>
    %15 = vector.shape_cast %14 : vector<8xf32> to vector<8x1xf32>
    %cst_4 = arith.constant 0.00392156886 : f32
    %16 = vector.broadcast %cst_4 : f32 to vector<8x1xf32>
    %17 = arith.mulf %15, %16 : vector<8x1xf32>
    %18 = math.sqrt %17 : vector<8x1xf32>
    %cst_5 = arith.constant 9.99999997E-7 : f32
    %19 = vector.broadcast %cst_5 : f32 to vector<8x1xf32>
    %20 = arith.addf %18, %19 : vector<8x1xf32>
    %21 = arith.divf %4, %20 : vector<8x1xf32>
    %22 = arith.mulf %10, %21 : vector<8x1xf32>
    %23 = arith.subf %5, %22 : vector<8x1xf32>
    %24 = vector.broadcast %21 : vector<8x1xf32> to vector<8x256xf32>
    %25 = arith.mulf %6, %24 : vector<8x256xf32>
    %26 = vector.broadcast %23 : vector<8x1xf32> to vector<8x256xf32>
    %27 = arith.addf %25, %26 : vector<8x256xf32>
    %c0_6 = arith.constant 0 : index
    %c0_7 = arith.constant 0 : index
    %28 = vector.load %arg3[%c0_6, %c0_7] : memref<8x256xf32, #tpu.memory_space<vmem>>, vector<8x256xf32>
    tpu.vector_store %arg3[%c0_6, %c0_7], %27 {strides = array<i32>} : memref<8x256xf32, #tpu.memory_space<vmem>>, vector<8x256xf32>,
    return
  }
  func.func @transform_0(%arg0: i32) -> (i32, i32) {
    %c0_i32 = arith.constant 0 : i32
    %c0_i32_0 = arith.constant 0 : i32
    return %arg0, %c0_i32 : i32, i32
  }
  func.func @transform_1(%arg0: i32) -> (i32, i32) {
    %c0_i32 = arith.constant 0 : i32
    %c0_i32_0 = arith.constant 0 : i32
    %c0_i32_1 = arith.constant 0 : i32
    return %c0_i32, %c0_i32_0 : i32, i32
  }
  func.func @transform_2(%arg0: i32) -> (i32, i32) {
    %c0_i32 = arith.constant 0 : i32
    %c0_i32_0 = arith.constant 0 : i32
    return %arg0, %c0_i32 : i32, i32
  }
}

</mosaic_0001>

<llo_original>
// kernel: tpu_custom_call.1
$region0: #{tpu_custom_call.1}
  #allocation0 [shape = 'u32[]', space=smem, size = 0x4, offset = 0x4, fixed_abs, tag = 'smem constant byte address 0x4 - core index']
  #allocation1 [shape = 'u32[144,128]{1,0:T(1,128)}', space=vmem, size = 0x12000, scoped, tag = 'internal scratch']
  %s0 = inlined_call_operand.hbm [shape: f32[8,256], index: 0, kind: input, shape index: {}]
  %s1 = inlined_call_operand.vmem [shape: f32[8,2], index: 1, kind: input, shape index: {}]
  %s2 = inlined_call_operand.hbm [shape: f32[8,256], index: 2, kind: output, shape index: {}]
  %s3 = sld [smem:[#allocation0]]
  $region22: #{tpu_custom_call.1} parent=0
    _
  %s5 = ssub.s32 1, %s3
  %s6 = scalar_select 0, %s5, %s3
  $region1: #{tpu_custom_call.1} parent=0
    #allocation2 [shape = 'u8[8192]{0}', space=vmem, size = 0x2000, scoped, tag = 'input window, operand 0, single buffered']
    #allocation3 [shape = 's32[1]{0}', space=sflag, size = 0x4, scoped, tag = 'scoped memory for tpu_custom_call.1']
    #allocation4 [shape = 's32[1]{0}', space=sflag, size = 0x4, scoped, tag = 'scoped memory for tpu_custom_call.1']
    #allocation5 [shape = 'u8[8192]{0}', space=vmem, size = 0x2000, scoped, tag = 'output window, operand 0, single buffered']
    %7 = vsyncpa [#allocation3], 0
    %8 = vsyncpa [#allocation4], 0
    // Predicated region
    $region2: #{tpu_custom_call.1} parent=1 // pred_check
      _
    $region3: #{tpu_custom_call.1} parent=1 // pred_check_branch
      %10 = sbr.rel (0) target = $region5
    $region4: #{tpu_custom_call.1} parent=1 // pred_region
      %s12 = ssub.s32 256, 256
      %13 = vsyncadd [#allocation3], %s12
      %s15 = sshll.u32 [#allocation2], 4
      %s16 = int_to_ptr.vmem [resolvable:$true] %s15
      %18 = dma.hbm_to_vmem [thread:$0]  %s0, 256, %s16, [#allocation3]
    $region5: #{tpu_custom_call.1} parent=1 // pred_fallthru
      _
    // Predicated region
    $region6: #{tpu_custom_call.1} parent=1 // pred_check
      _
    $region7: #{tpu_custom_call.1} parent=1 // pred_check_branch
      %20 = sbr.rel (0) target = $region9
    $region8: #{tpu_custom_call.1} parent=1 // pred_region
      _
    $region9: #{tpu_custom_call.1} parent=1 // pred_fallthru
      _
    // Predicated region
    $region10: #{tpu_custom_call.1} parent=1 // pred_check
      _
    $region11: #{tpu_custom_call.1} parent=1 // pred_check_branch
      %22 = sbr.rel (0) target = $region13
    $region12: #{tpu_custom_call.1} parent=1 // pred_region
      %23 = dma.done [#allocation3], 256
    $region13: #{tpu_custom_call.1} parent=1 // pred_fallthru
      _
    %s24 = smul.u32 0, 8
    %s25 = scalar_lea.vmem %s1, %s24
    %v26 = vld [vmem:[%s25] sm:$0xff]
    %v27 = vld [vmem:[#allocation2] sm:$0xff]
    %v28 = vld [vmem:[#allocation2 + $0x8] sm:$0xff]
    %v29 = vadd.f32 %v27, %v28
    %30 = vadd.xlane.f32.xlu0 %v29
    %v31 = vpop.xlane.xlu0 %30
    %v32 = vrcp.pop 256.0
    %v33 = vmul.f32 %v31, %v32
    %v34 = vsub.f32 %v27, %v33
    %v35 = vsub.f32 %v28, %v33
    %v36 = vmul.f32 %v34, %v34
    %v37 = vmul.f32 %v35, %v35
    %v38 = vadd.f32 %v36, %v37
    %39 = vadd.xlane.f32.xlu0 %v38
    %v40 = vpop.xlane.xlu0 %39
    %v41 = vmul.f32 %v40, 0.003921569
    %v42 = vrsqrt.pop %v41
    %v43 = vmul.f32 %v41, %v42
    %vm44 = vcmp.eq.f32.partialorder %v41, inf
    %v45 = vsel %vm44, %v41, %v43
    %vm46 = vcmp.eq.f32.partialorder %v41, 0.0
    %v47 = vand.u32 %v41, 2147483648
    %v48 = vsel %vm46, %v47, %v45
    %v49 = vadd.f32 %v48, 1e-06
    %v50 = vrcp.pop %v49
    %v51 = vmul.f32 %v26, %v50
    %v52 = vmul.f32 %v33, %v51
    %54 = vrot.lane.b32.xlu0 %v52, 1
    %v55 = vpop.permute.xlu0 %54
    %v57 = vsub.f32 %v26, %v55
    %59 = vset.pattern.permute.xlu0 0
    %60 = vperm.xlu0 %59, %v51
    %v61 = vpop.permute.xlu0 %60
    %v63 = vmul.f32 %v27, %v61
    %v64 = vmul.f32 %v28, %v61
    %66 = vset.pattern.permute.xlu0 1
    %67 = vperm.xlu0 %66, %v57
    %v68 = vpop.permute.xlu0 %67
    %v70 = vadd.f32 %v63, %v68
    %v71 = vadd.f32 %v64, %v68
    %72 = vst [vmem:[#allocation5] sm:$0xff] %v70
    %73 = vst [vmem:[#allocation5 + $0x8] sm:$0xff] %v71
    // Predicated region
    $region14: #{tpu_custom_call.1} parent=1 // pred_check
      _
    $region15: #{tpu_custom_call.1} parent=1 // pred_check_branch
      %75 = sbr.rel (0) target = $region17
    $region16: #{tpu_custom_call.1} parent=1 // pred_region
      %s77 = ssub.s32 256, 256
      %78 = vsyncadd [#allocation4], %s77
      %s80 = sshll.u32 [#allocation5], 4
      %s81 = int_to_ptr.vmem [resolvable:$true] %s80
      %83 = dma.vmem_to_hbm [thread:$0]  %s81, 256, %s2, [#allocation4]
    $region17: #{tpu_custom_call.1} parent=1 // pred_fallthru
      _
    // Predicated region
    $region18: #{tpu_custom_call.1} parent=1 // pred_check
      _
    $region19: #{tpu_custom_call.1} parent=1 // pred_check_branch
      %85 = sbr.rel (0) target = $region21
    $region20: #{tpu_custom_call.1} parent=1 // pred_region
      %86 = dma.done [#allocation4], 256
    $region21: #{tpu_custom_call.1} parent=1 // pred_fallthru
      _
    %87 = vsyncpa [#allocation3], 1
    %88 = vsyncpa [#allocation4], 1

</llo_original>
